<compile_context>
chip_gen: v7x
topology: tpu7x:2x2x1
jax: 0.10.0
libtpu: 0.0.40
codegen_flags: <defaults>
</compile_context>

<pallas_src>
import functools

import jax
import jax.numpy as jnp
from jax.experimental import pallas as pl
from jax.experimental.pallas import tpu as pltpu

EPS = 1e-5


def _ln4dcf_kernel(x_ref, g_ref, b_ref, o_ref, *, eps, inv_cq):
    """One (1, C, tile_T, Q) block: joint (C, Q) stats for tile_T frames."""
    x = x_ref[...]                                   # (1, C, tT, Q) f32
    # Mean over (C, Q): cheap VALU adds across the C slabs first, then one
    # XLU lane-reduce over Q.
    s = jnp.sum(x, axis=1, keepdims=True)            # (1, 1, tT, Q)
    s = jnp.sum(s, axis=3, keepdims=True)            # (1, 1, tT, 1)
    mu = s * inv_cq
    xc = x - mu
    s2 = jnp.sum(xc * xc, axis=1, keepdims=True)
    s2 = jnp.sum(s2, axis=3, keepdims=True)
    var = s2 * inv_cq                                 # biased variance
    inv_std = jax.lax.rsqrt(var + eps)                # EUP slot
    o_ref[...] = xc * inv_std * g_ref[...] + b_ref[...]


def _pick_tile_t(C, T, Q, target_block_bytes=2 * 1024 * 1024):
    """Largest tile_T (multiple of 8, or the full T) within the byte budget."""
    bytes_per_frame = C * Q * 4
    t = max(1, target_block_bytes // bytes_per_frame)
    if t >= T:
        return T                      # full dim: always a legal block extent
    t = max(8, (t // 8) * 8)          # sublane-aligned tile
    return min(t, T)


def layernorm4dcf(x, gamma, beta, eps=EPS, tile_t=None):
    """LayerNormalization4DCF.forward: stats over (C, Q) per (b, t)."""
    B, C, T, Q = x.shape
    gamma = jnp.asarray(gamma, jnp.float32).reshape(1, C, 1, Q)
    beta = jnp.asarray(beta, jnp.float32).reshape(1, C, 1, Q)
    if tile_t is None:
        tile_t = _pick_tile_t(C, T, Q)
    grid = (B, pl.cdiv(T, tile_t))
    kernel = functools.partial(_ln4dcf_kernel, eps=eps, inv_cq=1.0 / (C * Q))
    return pl.pallas_call(
        kernel,
        grid=grid,
        in_specs=[
            pl.BlockSpec((1, C, tile_t, Q), lambda b, t: (b, 0, t, 0)),
            pl.BlockSpec((1, C, 1, Q), lambda b, t: (0, 0, 0, 0)),
            pl.BlockSpec((1, C, 1, Q), lambda b, t: (0, 0, 0, 0)),
        ],
        out_specs=pl.BlockSpec((1, C, tile_t, Q), lambda b, t: (b, 0, t, 0)),
        out_shape=jax.ShapeDtypeStruct((B, C, T, Q), jnp.float32),
        compiler_params=pltpu.CompilerParams(
            dimension_semantics=("parallel", "parallel"),
            vmem_limit_bytes=32 * 1024 * 1024,
        ),
    )(x.astype(jnp.float32), gamma, beta)


def layernorm4dcf_ref(x, gamma, beta, eps=EPS):
    """Pure-JAX reference (mirrors the PyTorch forward)."""
    mu = jnp.mean(x, axis=(1, 3), keepdims=True)
    var = jnp.mean((x - mu) ** 2, axis=(1, 3), keepdims=True)
    g = jnp.reshape(gamma, (1, x.shape[1], 1, x.shape[3]))
    b = jnp.reshape(beta, (1, x.shape[1], 1, x.shape[3]))
    return (x - mu) / jnp.sqrt(var + eps) * g + b


if __name__ == "__main__":
    key = jax.random.PRNGKey(0)
    k1, k2, k3, k4 = jax.random.split(key, 4)

    # Small case matching the module's NCHW convention: [B, C, T, Q].
    B, C, T, Q = 2, 4, 16, 16
    x = jax.random.normal(k1, (B, C, T, Q), dtype=jnp.float32)
    gamma = (jnp.ones((1, C, 1, Q), jnp.float32)
             + 0.1 * jax.random.normal(k2, (1, C, 1, Q), dtype=jnp.float32))
    beta = 0.1 * jax.random.normal(k3, (1, C, 1, Q), dtype=jnp.float32)

    fwd = jax.jit(layernorm4dcf)
    y = fwd(x, gamma, beta)
    jax.block_until_ready(y)
    y_ref = layernorm4dcf_ref(x, gamma, beta)
    assert y.shape == (B, C, T, Q), y.shape
    assert jnp.allclose(y, y_ref, atol=1e-5, rtol=1e-5), float(
        jnp.max(jnp.abs(y - y_ref)))

    # Larger case exercising the tiled grid (tile_t < T with a remainder
    # block) and the lane-dense Q = 128 path.
    B2, C2, T2, Q2 = 2, 8, 100, 128
    x2 = jax.random.normal(k4, (B2, C2, T2, Q2), dtype=jnp.float32)
    g2 = jnp.ones((1, C2, 1, Q2), jnp.float32)
    b2 = jnp.zeros((1, C2, 1, Q2), jnp.float32)
    fwd2 = jax.jit(functools.partial(layernorm4dcf, tile_t=16))
    y2 = fwd2(x2, g2, b2)
    jax.block_until_ready(y2)
    y2_ref = layernorm4dcf_ref(x2, g2, b2)
    assert jnp.allclose(y2, y2_ref, atol=1e-5, rtol=1e-5), float(
        jnp.max(jnp.abs(y2 - y2_ref)))
    assert bool(jnp.all(jnp.isfinite(y)) and jnp.all(jnp.isfinite(y2)))

    print("KERNEL_OK")
</pallas_src>

<mosaic_0001>
module attributes {stable_mosaic.version = 11 : i64} {
  func.func @_ln4dcf_kernel(%arg0: i32, %arg1: i32, %arg2: memref<1x4x16x16xf32, #tpu.memory_space<vmem>>, %arg3: memref<1x4x1x16xf32, #tpu.memory_space<vmem>>, %arg4: memref<1x4x1x16xf32, #tpu.memory_space<vmem>>, %arg5: memref<1x4x16x16xf32, #tpu.memory_space<vmem>>) attributes {dimension_semantics = [#tpu.dimension_semantics<parallel>, #tpu.dimension_semantics<parallel>], iteration_bounds = array<i64: 2, 1>, scalar_prefetch = 0 : i64, scratch_operands = 0 : i64, tpu.core_type = #tpu.core_type<tc>, window_params = [{transform_indices = @transform_0, window_bounds = array<i64: 1, 4, 16, 16>}, {pipeline_mode = #tpu.pipeline_mode<synchronous>, transform_indices = @transform_1, window_bounds = array<i64: 1, 4, 1, 16>}, {pipeline_mode = #tpu.pipeline_mode<synchronous>, transform_indices = @transform_2, window_bounds = array<i64: 1, 4, 1, 16>}, {transform_indices = @transform_3, window_bounds = array<i64: 1, 4, 16, 16>}]} {
    %c0 = arith.constant 0 : index
    %c0_0 = arith.constant 0 : index
    %c0_1 = arith.constant 0 : index
    %c0_2 = arith.constant 0 : index
    %0 = vector.load %arg2[%c0, %c0_0, %c0_1, %c0_2] : memref<1x4x16x16xf32, #tpu.memory_space<vmem>>, vector<1x4x16x16xf32>
    %cst = arith.constant dense<0.000000e+00> : vector<1x16x16xf32>
    %1 = vector.multi_reduction <add>, %0, %cst [1] : vector<1x4x16x16xf32> to vector<1x16x16xf32>
    %2 = vector.shape_cast %1 : vector<1x16x16xf32> to vector<1x1x16x16xf32>
    %cst_3 = arith.constant dense<0.000000e+00> : vector<1x1x16xf32>
    %3 = vector.multi_reduction <add>, %2, %cst_3 [3] : vector<1x1x16x16xf32> to vector<1x1x16xf32>
    %4 = vector.shape_cast %3 : vector<1x1x16xf32> to vector<1x1x16x1xf32>
    %cst_4 = arith.constant 1.562500e-02 : f32
    %5 = vector.broadcast %cst_4 : f32 to vector<1x1x16x1xf32>
    %6 = arith.mulf %4, %5 : vector<1x1x16x1xf32>
    %7 = vector.broadcast %6 : vector<1x1x16x1xf32> to vector<1x4x16x16xf32>
    %8 = arith.subf %0, %7 : vector<1x4x16x16xf32>
    %9 = arith.mulf %8, %8 : vector<1x4x16x16xf32>
    %cst_5 = arith.constant dense<0.000000e+00> : vector<1x16x16xf32>
    %10 = vector.multi_reduction <add>, %9, %cst_5 [1] : vector<1x4x16x16xf32> to vector<1x16x16xf32>
    %11 = vector.shape_cast %10 : vector<1x16x16xf32> to vector<1x1x16x16xf32>
    %cst_6 = arith.constant dense<0.000000e+00> : vector<1x1x16xf32>
    %12 = vector.multi_reduction <add>, %11, %cst_6 [3] : vector<1x1x16x16xf32> to vector<1x1x16xf32>
    %13 = vector.shape_cast %12 : vector<1x1x16xf32> to vector<1x1x16x1xf32>
    %cst_7 = arith.constant 1.562500e-02 : f32
    %14 = vector.broadcast %cst_7 : f32 to vector<1x1x16x1xf32>
    %15 = arith.mulf %13, %14 : vector<1x1x16x1xf32>
    %cst_8 = arith.constant 9.99999974E-6 : f32
    %16 = vector.broadcast %cst_8 : f32 to vector<1x1x16x1xf32>
    %17 = arith.addf %15, %16 : vector<1x1x16x1xf32>
    %18 = math.rsqrt %17 : vector<1x1x16x1xf32>
    %19 = vector.broadcast %18 : vector<1x1x16x1xf32> to vector<1x4x16x16xf32>
    %20 = arith.mulf %8, %19 : vector<1x4x16x16xf32>
    %c0_9 = arith.constant 0 : index
    %c0_10 = arith.constant 0 : index
    %c0_11 = arith.constant 0 : index
    %c0_12 = arith.constant 0 : index
    %21 = vector.load %arg3[%c0_9, %c0_10, %c0_11, %c0_12] : memref<1x4x1x16xf32, #tpu.memory_space<vmem>>, vector<1x4x1x16xf32>
    %22 = vector.broadcast %21 : vector<1x4x1x16xf32> to vector<1x4x16x16xf32>
    %23 = arith.mulf %20, %22 : vector<1x4x16x16xf32>
    %c0_13 = arith.constant 0 : index
    %c0_14 = arith.constant 0 : index
    %c0_15 = arith.constant 0 : index
    %c0_16 = arith.constant 0 : index
    %24 = vector.load %arg4[%c0_13, %c0_14, %c0_15, %c0_16] : memref<1x4x1x16xf32, #tpu.memory_space<vmem>>, vector<1x4x1x16xf32>
    %25 = vector.broadcast %24 : vector<1x4x1x16xf32> to vector<1x4x16x16xf32>
    %26 = arith.addf %23, %25 : vector<1x4x16x16xf32>
    %c0_17 = arith.constant 0 : index
    %c0_18 = arith.constant 0 : index
    %c0_19 = arith.constant 0 : index
    %c0_20 = arith.constant 0 : index
    %27 = vector.load %arg5[%c0_17, %c0_18, %c0_19, %c0_20] : memref<1x4x16x16xf32, #tpu.memory_space<vmem>>, vector<1x4x16x16xf32>
    tpu.vector_store %arg5[%c0_17, %c0_18, %c0_19, %c0_20], %26 {strides = array<i32>} : memref<1x4x16x16xf32, #tpu.memory_space<vmem>>, vector<1x4x16x16xf32>,
    return
  }
  func.func @transform_0(%arg0: i32, %arg1: i32) -> (i32, i32, i32, i32) {
    %c0_i32 = arith.constant 0 : i32
    %c0_i32_0 = arith.constant 0 : i32
    %c0_i32_1 = arith.constant 0 : i32
    return %arg0, %c0_i32, %arg1, %c0_i32_0 : i32, i32, i32, i32
  }
  func.func @transform_1(%arg0: i32, %arg1: i32) -> (i32, i32, i32, i32) {
    %c0_i32 = arith.constant 0 : i32
    %c0_i32_0 = arith.constant 0 : i32
    %c0_i32_1 = arith.constant 0 : i32
    %c0_i32_2 = arith.constant 0 : i32
    %c0_i32_3 = arith.constant 0 : i32
    return %c0_i32, %c0_i32_0, %c0_i32_1, %c0_i32_2 : i32, i32, i32, i32
  }
  func.func @transform_2(%arg0: i32, %arg1: i32) -> (i32, i32, i32, i32) {
    %c0_i32 = arith.constant 0 : i32
    %c0_i32_0 = arith.constant 0 : i32
    %c0_i32_1 = arith.constant 0 : i32
    %c0_i32_2 = arith.constant 0 : i32
    %c0_i32_3 = arith.constant 0 : i32
    return %c0_i32, %c0_i32_0, %c0_i32_1, %c0_i32_2 : i32, i32, i32, i32
  }
  func.func @transform_3(%arg0: i32, %arg1: i32) -> (i32, i32, i32, i32) {
    %c0_i32 = arith.constant 0 : i32
    %c0_i32_0 = arith.constant 0 : i32
    %c0_i32_1 = arith.constant 0 : i32
    return %arg0, %c0_i32, %arg1, %c0_i32_0 : i32, i32, i32, i32
  }
}

</mosaic_0001>

<llo_original>
// kernel: layernorm4dcf.1
$region0: #{layernorm4dcf.1}
  #allocation0 [shape = 'u32[]', space=smem, size = 0x4, offset = 0x4, fixed_abs, tag = 'smem constant byte address 0x4 - core index']
  #allocation1 [shape = 'u32[144,128]{1,0:T(1,128)}', space=vmem, size = 0x12000, scoped, tag = 'internal scratch']
  %s0 = inlined_call_operand.hbm [shape: f32[2,4,16,16], index: 0, kind: input, shape index: {}]
  %s1 = inlined_call_operand.hbm [shape: f32[1,4,1,16], index: 1, kind: input, shape index: {}]
  %s2 = inlined_call_operand.vmem [shape: f32[1,4,1,16], index: 2, kind: input, shape index: {}]
  %s3 = inlined_call_operand.hbm [shape: f32[2,4,16,16], index: 3, kind: output, shape index: {}]
  %s4 = sld [smem:[#allocation0]]
  $region53: #{layernorm4dcf.1} parent=0
    _
  %s6 = ssub.s32 1, %s4
  %s7 = scalar_select 0, %s6, %s4
  $region1: #{layernorm4dcf.1} parent=0
    #allocation2 [shape = 'u8[65536]{0}', space=vmem, size = 0x10000, scoped, tag = 'input window, operand 0']
    #allocation3 [shape = 's32[2]{0}', space=sflag, size = 0x8, scoped, tag = 'scoped memory for layernorm4dcf.1']
    #allocation4 [shape = 's32[2]{0}', space=sflag, size = 0x8, scoped, tag = 'scoped memory for layernorm4dcf.1']
    #allocation5 [shape = 'u8[2048]{0}', space=vmem, size = 0x800, scoped, tag = 'input window, operand 1, single buffered']
    #allocation6 [shape = 's32[1]{0}', space=sflag, size = 0x4, scoped, tag = 'scoped memory for layernorm4dcf.1']
    #allocation7 [shape = 'u8[65536]{0}', space=vmem, size = 0x10000, scoped, tag = 'output window, operand 0']
    %8 = vsyncpa [#allocation3], 0
    %s9 = scalar_lea.sflag [#allocation3], 1
    %10 = vsyncpa %s9, 0
    %11 = vsyncpa [#allocation6], 0
    %12 = vsyncpa [#allocation4], 0
    %s13 = scalar_lea.sflag [#allocation4], 1
    %14 = vsyncpa %s13, 0
    loop: start=0, step=1, limit=4
    $region2: #{layernorm4dcf.1} parent=1 // loop_pre_header
      _
    $region3: #{layernorm4dcf.1} parent=1 // loop_header
      %s16 = sphi 0, %s20
      %p17 = scmp.ge.s32.totalorder %s16, 4
      %s23 = sphi 0, %s35
      %s24 = sphi 0, %s31
      %s25 = sphi 0, %s23
      %s26 = sphi 0, %s24
      %s27 = sphi 0, %s25
      %s28 = sphi 0, %s26
      %s40 = sphi 0, %s42
      %s43 = sphi 0, %s40
      %s44 = sphi 0, %s43
      %s60 = sphi 0, %s44
      %s64 = sphi 0, %s64
      %s66 = sphi 0, %s64
      %s67 = sphi 0, %s66
      %s81 = sphi 0, %s67
      %s85 = sphi 0, %s85
      %s87 = sphi 0, %s85
      %s88 = sphi 0, %s87
      %s102 = sphi 0, %s88
      %s110 = sphi 0, %s112
      %s113 = sphi 0, %s110
      %s114 = sphi 0, %s113
      %s130 = sphi 0, %s114
    $region4: #{layernorm4dcf.1} parent=1 // loop_header_branch
      %19 = sbr.rel (%p17) target = $region8
    $region5: #{layernorm4dcf.1} parent=1 // loop_body
      %s21 = ssub.s32 %s16, 1
      %s22 = ssub.s32 %s16, 2
      %s29 = sadd.s32 1, %s24
      %p30 = scmp.ge.s32.totalorder %s29, 1
      %s31 = scalar_select %p30, 0, %s29
      %s32 = sadd.s32 1, %s23
      %s33 = scalar_select %p30, %s32, %s23
      %p34 = scmp.ge.s32.totalorder %s33, 2
      %s35 = scalar_select %p34, 0, %s33
      %s36 = ssub.s32 %s23, %s35
      %s37 = ssub.s32 %s24, %s31
      %s38 = sor.u32 %s36, %s37
      %p39 = scmp.eq.s32.totalorder %s38, 0
      %s41 = sadd.s32 %s40, 1
      %s42 = scalar_select %p39, %s40, %s41
      %p45 = pneg %p39
      %p46 = scmp.eq.s32.totalorder %s16, 1
      %p47 = por %p45, %p46
      %p48 = scmp.ne.s32.totalorder %s40, %s43
      %p49 = scmp.eq.s32.totalorder %s16, 0
      %p50 = por %p48, %p49
      %p51 = scmp.ne.s32.totalorder %s40, %s43
      %p52 = scmp.eq.s32.totalorder %s21, 1
      %p53 = por %p51, %p52
      %p54 = scmp.ne.s32.totalorder %s43, %s44
      %p55 = scmp.eq.s32.totalorder %s21, 0
      %p56 = por %p54, %p55
      %p57 = scmp.ne.s32.totalorder %s43, %s44
      %p58 = scmp.eq.s32.totalorder %s22, 1
      %p59 = por %p57, %p58
      %p61 = scmp.ne.s32.totalorder %s44, %s60
      %p62 = scmp.eq.s32.totalorder %s22, 0
      %p63 = por %p61, %p62
      %s65 = sadd.s32 %s64, 1
      %p68 = scmp.eq.s32.totalorder %s16, 1
      %p69 = scmp.ne.s32.totalorder %s64, %s66
      %p70 = scmp.eq.s32.totalorder %s16, 0
      %p71 = por %p69, %p70
      %p72 = scmp.ne.s32.totalorder %s64, %s66
      %p73 = scmp.eq.s32.totalorder %s21, 1
      %p74 = por %p72, %p73
      %p75 = scmp.ne.s32.totalorder %s66, %s67
      %p76 = scmp.eq.s32.totalorder %s21, 0
      %p77 = por %p75, %p76
      %p78 = scmp.ne.s32.totalorder %s66, %s67
      %p79 = scmp.eq.s32.totalorder %s22, 1
      %p80 = por %p78, %p79
      %p82 = scmp.ne.s32.totalorder %s67, %s81
      %p83 = scmp.eq.s32.totalorder %s22, 0
      %p84 = por %p82, %p83
      %s86 = sadd.s32 %s85, 1
      %p89 = scmp.eq.s32.totalorder %s16, 1
      %p90 = scmp.ne.s32.totalorder %s85, %s87
      %p91 = scmp.eq.s32.totalorder %s16, 0
      %p92 = por %p90, %p91
      %p93 = scmp.ne.s32.totalorder %s85, %s87
      %p94 = scmp.eq.s32.totalorder %s21, 1
      %p95 = por %p93, %p94
      %p96 = scmp.ne.s32.totalorder %s87, %s88
      %p97 = scmp.eq.s32.totalorder %s21, 0
      %p98 = por %p96, %p97
      %p99 = scmp.ne.s32.totalorder %s87, %s88
      %p100 = scmp.eq.s32.totalorder %s22, 1
      %p101 = por %p99, %p100
      %p103 = scmp.ne.s32.totalorder %s88, %s102
      %p104 = scmp.eq.s32.totalorder %s22, 0
      %p105 = por %p103, %p104
      %s106 = ssub.s32 %s23, %s35
      %s107 = ssub.s32 %s24, %s31
      %s108 = sor.u32 %s106, %s107
      %p109 = scmp.eq.s32.totalorder %s108, 0
      %s111 = sadd.s32 %s110, 1
      %s112 = scalar_select %p109, %s110, %s111
      %p115 = pneg %p109
      %p116 = scmp.eq.s32.totalorder %s16, 1
      %p117 = por %p115, %p116
      %p118 = scmp.ne.s32.totalorder %s110, %s113
      %p119 = scmp.eq.s32.totalorder %s16, 0
      %p120 = por %p118, %p119
      %p121 = scmp.ne.s32.totalorder %s110, %s113
      %p122 = scmp.eq.s32.totalorder %s21, 1
      %p123 = por %p121, %p122
      %p124 = scmp.ne.s32.totalorder %s113, %s114
      %p125 = scmp.eq.s32.totalorder %s21, 0
      %p126 = por %p124, %p125
      %p127 = scmp.ne.s32.totalorder %s113, %s114
      %p128 = scmp.eq.s32.totalorder %s22, 1
      %p129 = por %p127, %p128
      %p131 = scmp.ne.s32.totalorder %s114, %s130
      %p132 = scmp.eq.s32.totalorder %s22, 0
      %p133 = por %p131, %p132
      %p134 = scmp.le.s32.totalorder 1, %s16
      %p135 = scmp.lt.s32.totalorder %s16, 3
      %p136 = pnand %p134, %p135
      %p137 = pneg %p136
      // Predicated region
      $region9: #{layernorm4dcf.1} parent=5 // pred_check
        _
      $region10: #{layernorm4dcf.1} parent=5 // pred_check_branch
        %139 = sbr.rel (%p136) target = $region12
      $region11: #{layernorm4dcf.1} parent=5 // pred_region
        %s140 = ssub.s32 %s16, 1
        // Predicated region
        $region13: #{layernorm4dcf.1} parent=11 // pred_check
          %p141 = pneg %p77
        $region14: #{layernorm4dcf.1} parent=11 // pred_check_branch
          %143 = sbr.rel (%p141) target = $region16
        $region15: #{layernorm4dcf.1} parent=11 // pred_region
          %s145 = ssub.s32 64, 64
          %146 = vsyncadd [#allocation6], %s145
          %s147 = sshll.u32 [#allocation5], 4
          %s148 = int_to_ptr.vmem [resolvable:$true] %s147
          %153 = dma.hbm_to_vmem [thread:$0]  %s1, 64, %s148, [#allocation6], 16, 16, 1
        $region16: #{layernorm4dcf.1} parent=11 // pred_fallthru
          _
        // Predicated region
        $region17: #{layernorm4dcf.1} parent=11 // pred_check
          %p154 = pneg %p98
        $region18: #{layernorm4dcf.1} parent=11 // pred_check_branch
          %156 = sbr.rel (%p154) target = $region20
        $region19: #{layernorm4dcf.1} parent=11 // pred_region
          _
        $region20: #{layernorm4dcf.1} parent=11 // pred_fallthru
          _
      $region12: #{layernorm4dcf.1} parent=5 // pred_fallthru
        _
      %p157 = scmp.lt.s32.totalorder %s16, 2
      // Predicated region
      $region21: #{layernorm4dcf.1} parent=5 // pred_check
        %p158 = pneg %p157
      $region22: #{layernorm4dcf.1} parent=5 // pred_check_branch
        %160 = sbr.rel (%p158) target = $region24
      $region23: #{layernorm4dcf.1} parent=5 // pred_region
        // Predicated region
        $region25: #{layernorm4dcf.1} parent=23 // pred_check
          %p161 = pneg %p50
        $region26: #{layernorm4dcf.1} parent=23 // pred_check_branch
          %163 = sbr.rel (%p161) target = $region28
        $region27: #{layernorm4dcf.1} parent=23 // pred_region
          %s164 = sand.u32 %s40, 1
          %s165 = scalar_lea.sflag [#allocation3], %s164
          %s166 = sand.u32 %s40, 1
          %s167 = smul.addr %s166, 64
          %s168 = scalar_lea.vmem [#allocation2], %s167
          %s169 = smul.u32 2, %s24
          %s171 = ssub.s32 1024, 1024
          %172 = vsyncadd %s165, %s171
          %s173 = smul.addr %s23, 8
          %s174 = sadd.s32 %s169, %s173
          %s175 = smul.addr %s174, 128
          %s176 = scalar_lea.hbm %s0, %s175
          %s177 = sshll.u32 %s168, 4
          %s178 = int_to_ptr.vmem [resolvable:$true] %s177
          %183 = dma.hbm_to_vmem [thread:$0]  %s176, 1024, %s178, %s165, 128, 128, 8
        $region28: #{layernorm4dcf.1} parent=23 // pred_fallthru
          _
      $region24: #{layernorm4dcf.1} parent=5 // pred_fallthru
        _
      %p184 = scmp.le.s32.totalorder 1, %s16
      %p185 = scmp.lt.s32.totalorder %s16, 3
      %p186 = pnand %p184, %p185
      %p187 = pneg %p186
      // Predicated region
      $region29: #{layernorm4dcf.1} parent=5 // pred_check
        _
      $region30: #{layernorm4dcf.1} parent=5 // pred_check_branch
        %189 = sbr.rel (%p186) target = $region32
      $region31: #{layernorm4dcf.1} parent=5 // pred_region
        %s190 = ssub.s32 %s16, 1
        %s191 = sand.u32 %s43, 1
        %s192 = scalar_lea.sflag [#allocation3], %s191
        %s193 = sand.u32 %s43, 1
        %s194 = smul.addr %s193, 64
        %s195 = scalar_lea.vmem [#allocation2], %s194
        // Predicated region
        $region33: #{layernorm4dcf.1} parent=31 // pred_check
          %p196 = pneg %p56
        $region34: #{layernorm4dcf.1} parent=31 // pred_check_branch
          %198 = sbr.rel (%p196) target = $region36
        $region35: #{layernorm4dcf.1} parent=31 // pred_region
          %199 = dma.done %s192, 1024
        $region36: #{layernorm4dcf.1} parent=31 // pred_fallthru
          _
        // Predicated region
        $region37: #{layernorm4dcf.1} parent=31 // pred_check
          %p200 = pneg %p77
        $region38: #{layernorm4dcf.1} parent=31 // pred_check_branch
          %202 = sbr.rel (%p200) target = $region40
        $region39: #{layernorm4dcf.1} parent=31 // pred_region
          %203 = dma.done [#allocation6], 64
        $region40: #{layernorm4dcf.1} parent=31 // pred_fallthru
          _
        %s204 = sand.u32 %s43, 1
        %s205 = scalar_lea.sflag [#allocation3], %s204
        %s206 = sand.u32 %s43, 1
        %s207 = smul.addr %s206, 64
        %s208 = scalar_lea.vmem [#allocation2], %s207
        %p209 = pneg %p56
        %p210 = pneg %p53
        %p211 = pneg %p77
        %p212 = pneg %p74
        %p213 = pneg %p98
        %p214 = pneg %p95
        %p215 = pneg %p126
        %p216 = pneg %p123
        %s217 = sand.u32 %s113, 1
        %s218 = scalar_lea.sflag [#allocation4], %s217
        %s219 = sand.u32 %s113, 1
        %s220 = smul.addr %s219, 64
        %s221 = scalar_lea.vmem [#allocation7], %s220
        %s222 = smul.u32 2, %s26
        %s223 = smul.u32 2, %s26
        %v224 = vld [vmem:[%s195] sm:$0xff]
        %v225 = vld [vmem:[%s195 + $0x8] sm:$0xff]
        %v226 = vld [vmem:[%s195 + $0x10] sm:$0xff]
        %v227 = vld [vmem:[%s195 + $0x18] sm:$0xff]
        %v228 = vld [vmem:[%s195 + $0x20] sm:$0xff]
        %v229 = vld [vmem:[%s195 + $0x28] sm:$0xff]
        %v230 = vld [vmem:[%s195 + $0x30] sm:$0xff]
        %v231 = vld [vmem:[%s195 + $0x38] sm:$0xff]
        %vm232 = vcmask 130048
        %v233 = vsel %vm232, %v224, 0.0
        %v234 = vsel %vm232, %v226, 0.0
        %v235 = vadd.f32 %v233, %v234
        %v236 = vsel %vm232, %v228, 0.0
        %v237 = vadd.f32 %v235, %v236
        %v238 = vsel %vm232, %v230, 0.0
        %v239 = vadd.f32 %v237, %v238
        %v240 = vsel %vm232, %v225, 0.0
        %v241 = vsel %vm232, %v227, 0.0
        %v242 = vadd.f32 %v240, %v241
        %v243 = vsel %vm232, %v229, 0.0
        %v244 = vadd.f32 %v242, %v243
        %v245 = vsel %vm232, %v231, 0.0
        %v246 = vadd.f32 %v244, %v245
        %v247 = vsel %vm232, %v239, 0.0
        %248 = vadd.xlane.f32.xlu0 %v247
        %v249 = vpop.xlane.xlu0 %248
        %v250 = vsel %vm232, %v246, 0.0
        %251 = vadd.xlane.f32.xlu0 %v250
        %v252 = vpop.xlane.xlu0 %251
        %v253 = vmul.f32 %v249, 0.015625
        %v254 = vmul.f32 %v252, 0.015625
        %v255 = vsub.f32 %v224, %v253
        %v256 = vsub.f32 %v225, %v254
        %v257 = vsub.f32 %v226, %v253
        %v258 = vsub.f32 %v227, %v254
        %v259 = vsub.f32 %v228, %v253
        %v260 = vsub.f32 %v229, %v254
        %v261 = vsub.f32 %v230, %v253
        %v262 = vsub.f32 %v231, %v254
        %v263 = vmul.f32 %v255, %v255
        %v264 = vmul.f32 %v256, %v256
        %v265 = vmul.f32 %v257, %v257
        %v266 = vmul.f32 %v258, %v258
        %v267 = vmul.f32 %v259, %v259
        %v268 = vmul.f32 %v260, %v260
        %v269 = vmul.f32 %v261, %v261
        %v270 = vmul.f32 %v262, %v262
        %v271 = vsel %vm232, %v263, 0.0
        %v272 = vsel %vm232, %v265, 0.0
        %v273 = vadd.f32 %v271, %v272
        %v274 = vsel %vm232, %v267, 0.0
        %v275 = vadd.f32 %v273, %v274
        %v276 = vsel %vm232, %v269, 0.0
        %v277 = vadd.f32 %v275, %v276
        %v278 = vsel %vm232, %v264, 0.0
        %v279 = vsel %vm232, %v266, 0.0
        %v280 = vadd.f32 %v278, %v279
        %v281 = vsel %vm232, %v268, 0.0
        %v282 = vadd.f32 %v280, %v281
        %v283 = vsel %vm232, %v270, 0.0
        %v284 = vadd.f32 %v282, %v283
        %v285 = vsel %vm232, %v277, 0.0
        %286 = vadd.xlane.f32.xlu0 %v285
        %v287 = vpop.xlane.xlu0 %286
        %v288 = vsel %vm232, %v284, 0.0
        %289 = vadd.xlane.f32.xlu0 %v288
        %v290 = vpop.xlane.xlu0 %289
        %v291 = vmul.f32 %v287, 0.015625
        %v292 = vmul.f32 %v290, 0.015625
        %v293 = vadd.f32 %v291, 1e-05
        %v294 = vadd.f32 %v292, 1e-05
        %v295 = vrsqrt.pop %v293
        %v296 = vrsqrt.pop %v294
        %v297 = vmul.f32 %v255, %v295
        %v298 = vmul.f32 %v256, %v296
        %v299 = vmul.f32 %v257, %v295
        %v300 = vmul.f32 %v258, %v296
        %v301 = vmul.f32 %v259, %v295
        %v302 = vmul.f32 %v260, %v296
        %v303 = vmul.f32 %v261, %v295
        %v304 = vmul.f32 %v262, %v296
        %v305 = vld [vmem:[#allocation5] sm:$0x1]
        %v306 = vld [vmem:[#allocation5 + $0x1] sm:$0x1]
        %v307 = vld [vmem:[#allocation5 + $0x2] sm:$0x1]
        %v308 = vld [vmem:[#allocation5 + $0x3] sm:$0x1]
        %v313 = vlaneseq
        %v314 = vshrl.u32 %v313, 7
        %v315 = vsub.s32 0, %v314
        %v316 = vrot.slane %v305, %v315
        %v317 = vlaneseq
        %v318 = vshrl.u32 %v317, 7
        %v319 = vsub.s32 0, %v318
        %v320 = vrot.slane %v306, %v319
        %v321 = vlaneseq
        %v322 = vshrl.u32 %v321, 7
        %v323 = vsub.s32 0, %v322
        %v324 = vrot.slane %v307, %v323
        %v325 = vlaneseq
        %v326 = vshrl.u32 %v325, 7
        %v327 = vsub.s32 0, %v326
        %v328 = vrot.slane %v308, %v327
        %v333 = vmul.f32 %v297, %v316
        %v334 = vmul.f32 %v298, %v316
        %v335 = vmul.f32 %v299, %v320
        %v336 = vmul.f32 %v300, %v320
        %v337 = vmul.f32 %v301, %v324
        %v338 = vmul.f32 %v302, %v324
        %v339 = vmul.f32 %v303, %v328
        %v340 = vmul.f32 %v304, %v328
        %v341 = vld [vmem:[%s2] sm:$0x1]
        %v342 = vld [vmem:[%s2 + $0x1] sm:$0x1]
        %v343 = vld [vmem:[%s2 + $0x2] sm:$0x1]
        %v344 = vld [vmem:[%s2 + $0x3] sm:$0x1]
        %v349 = vlaneseq
        %v350 = vshrl.u32 %v349, 7
        %v351 = vsub.s32 0, %v350
        %v352 = vrot.slane %v341, %v351
        %v353 = vlaneseq
        %v354 = vshrl.u32 %v353, 7
        %v355 = vsub.s32 0, %v354
        %v356 = vrot.slane %v342, %v355
        %v357 = vlaneseq
        %v358 = vshrl.u32 %v357, 7
        %v359 = vsub.s32 0, %v358
        %v360 = vrot.slane %v343, %v359
        %v361 = vlaneseq
        %v362 = vshrl.u32 %v361, 7
        %v363 = vsub.s32 0, %v362
        %v364 = vrot.slane %v344, %v363
        %v369 = vadd.f32 %v333, %v352
        %v370 = vadd.f32 %v334, %v352
        %v371 = vadd.f32 %v335, %v356
        %v372 = vadd.f32 %v336, %v356
        %v373 = vadd.f32 %v337, %v360
        %v374 = vadd.f32 %v338, %v360
        %v375 = vadd.f32 %v339, %v364
        %v376 = vadd.f32 %v340, %v364
        %377 = vst.msk [vmem:[%s221] sm:$0xff] %vm232, %v369
        %378 = vst.msk [vmem:[%s221 + $0x8] sm:$0xff] %vm232, %v370
        %379 = vst.msk [vmem:[%s221 + $0x10] sm:$0xff] %vm232, %v371
        %380 = vst.msk [vmem:[%s221 + $0x18] sm:$0xff] %vm232, %v372
        %381 = vst.msk [vmem:[%s221 + $0x20] sm:$0xff] %vm232, %v373
        %382 = vst.msk [vmem:[%s221 + $0x28] sm:$0xff] %vm232, %v374
        %383 = vst.msk [vmem:[%s221 + $0x30] sm:$0xff] %vm232, %v375
        %384 = vst.msk [vmem:[%s221 + $0x38] sm:$0xff] %vm232, %v376
        %s385 = sand.u32 %s113, 1
        %s386 = scalar_lea.sflag [#allocation4], %s385
        %s387 = sand.u32 %s113, 1
        %s388 = smul.addr %s387, 64
        %s389 = scalar_lea.vmem [#allocation7], %s388
        // Predicated region
        $region41: #{layernorm4dcf.1} parent=31 // pred_check
          %p390 = pneg %p123
        $region42: #{layernorm4dcf.1} parent=31 // pred_check_branch
          %392 = sbr.rel (%p390) target = $region44
        $region43: #{layernorm4dcf.1} parent=31 // pred_region
          %s393 = smul.u32 2, %s26
          %s395 = ssub.s32 1024, 1024
          %396 = vsyncadd %s386, %s395
          %s397 = smul.addr %s25, 8
          %s398 = sadd.s32 %s393, %s397
          %s399 = smul.addr %s398, 128
          %s400 = scalar_lea.hbm %s3, %s399
          %s401 = sshll.u32 %s389, 4
          %s402 = int_to_ptr.vmem [resolvable:$true] %s401
          %407 = dma.vmem_to_hbm [thread:$0]  %s402, 1024, %s400, %s386, 128, 128, 8
        $region44: #{layernorm4dcf.1} parent=31 // pred_fallthru
          _
      $region32: #{layernorm4dcf.1} parent=5 // pred_fallthru
        _
      %p408 = scmp.le.s32.totalorder 2, %s16
      // Predicated region
      $region45: #{layernorm4dcf.1} parent=5 // pred_check
        %p409 = pneg %p408
      $region46: #{layernorm4dcf.1} parent=5 // pred_check_branch
        %411 = sbr.rel (%p409) target = $region48
      $region47: #{layernorm4dcf.1} parent=5 // pred_region
        %s412 = ssub.s32 %s16, 2
        // Predicated region
        $region49: #{layernorm4dcf.1} parent=47 // pred_check
          %p413 = pneg %p129
        $region50: #{layernorm4dcf.1} parent=47 // pred_check_branch
          %415 = sbr.rel (%p413) target = $region52
        $region51: #{layernorm4dcf.1} parent=47 // pred_region
          %s416 = sand.u32 %s114, 1
          %s417 = scalar_lea.sflag [#allocation4], %s416
          %s418 = sand.u32 %s114, 1
          %s419 = smul.addr %s418, 64
          %s420 = scalar_lea.vmem [#allocation7], %s419
          %421 = dma.done %s417, 1024
        $region52: #{layernorm4dcf.1} parent=47 // pred_fallthru
          _
      $region48: #{layernorm4dcf.1} parent=5 // pred_fallthru
        _
    $region6: #{layernorm4dcf.1} parent=1 // loop_footer
      %s20 = sadd.s32 1, %s16
    $region7: #{layernorm4dcf.1} parent=1 // loop_footer_branch
      %15 = sbr.rel target = $region3
    $region8: #{layernorm4dcf.1} parent=1 // loop_exit
      _
    %422 = vsyncpa [#allocation3], 1
    %s423 = scalar_lea.sflag [#allocation3], 1
    %424 = vsyncpa %s423, 1
    %425 = vsyncpa [#allocation6], 1
    %426 = vsyncpa [#allocation4], 1
    %s427 = scalar_lea.sflag [#allocation4], 1
    %428 = vsyncpa %s427, 1

</llo_original>
